<compile_context>
chip_gen: v6e
topology: v6e:2x2x1
jax: 0.10.0
libtpu: 0.0.40
codegen_flags: <defaults>
</compile_context>

<pallas_src>
import functools
import math

import jax
import jax.numpy as jnp
from jax.experimental import pallas as pl
from jax.experimental.pallas import tpu as pltpu


def _gelu_exact(x):
    # PyTorch nn.GELU() default is the exact erf-based GELU.
    return 0.5 * x * (1.0 + jax.lax.erf(x * (1.0 / math.sqrt(2.0))))


def _sigmoid(x):
    # Numerically stable logistic: exp lands on the EUP, one divide, and the
    # select avoids exp overflow for large-magnitude negative inputs.
    e = jnp.exp(-jnp.abs(x))
    y = 1.0 / (1.0 + e)
    return jnp.where(x >= 0, y, 1.0 - y)


# Per-Linear activation (Dropout(p=0.1) is identity in eval mode).
# TODO(synk): training-mode stochastic dropout (pltpu.prng_*) intentionally not applied.
_ACTS = (_gelu_exact, _gelu_exact, _sigmoid, _gelu_exact, _gelu_exact, None)


def mlp_kernel(x_ref, p_ref, o_ref, *, fdim, n_layers):
    """x_ref: (fdim, tile_n) activations (batch on lanes).
    p_ref: (fdim, n_layers*fdim + n_layers) packed params:
      columns [l*fdim:(l+1)*fdim] = W_l (out, in) zero-padded to (fdim, fdim)
      column  [n_layers*fdim + l] = b_l zero-padded to (fdim,)
    o_ref: (fdim, tile_n); rows >= f_out are exact zeros (zero-padded W/b)."""
    p = p_ref[...]
    h = x_ref[...]
    for l in range(n_layers):
        w = p[:, l * fdim:(l + 1) * fdim]                              # (fdim, fdim)
        b = p[:, n_layers * fdim + l: n_layers * fdim + l + 1]         # (fdim, 1)
        h = jnp.dot(w, h, preferred_element_type=jnp.float32) + b      # (fdim, tile_n)
        act = _ACTS[l]
        if act is not None:
            h = act(h)
    o_ref[...] = h.astype(o_ref.dtype)


def regression_non_linear_forward(x, params, *, tile_n=512):
    """x: (N, input_features) float32.
    params: list of (W(out, in), b(out,)) in PyTorch layout (no pre-transpose)."""
    n, f_in = x.shape
    n_layers = len(params)
    assert n_layers == len(_ACTS)
    f_out = params[-1][0].shape[0]

    # Pad every feature dim up to a sublane multiple (8). Zero padding is exact:
    # padded W rows/cols and b entries are 0, so padded activation rows never
    # leak into real outputs.
    fdim = ((max([f_in] + [w.shape[0] for (w, _) in params]) + 7) // 8) * 8

    # Generation-aware tiling: keep >= 2 "parallel" grid steps when the batch
    # allows it so v7x's two TensorCores both get work (v5e/v6e have 1 TC);
    # tile_n stays a multiple of 128 (lane axis).
    tile_n = max(128, (tile_n // 128) * 128)
    while tile_n > 128 and pl.cdiv(n, tile_n) < 2:
        tile_n //= 2
    n_pad = pl.cdiv(n, tile_n) * tile_n

    # Pack all weights + biases into one slab -> a single parameter DMA.
    cols = n_layers * fdim + n_layers
    slab = jnp.zeros((fdim, cols), jnp.float32)
    for l, (w, b) in enumerate(params):
        o_f, i_f = w.shape
        slab = slab.at[:o_f, l * fdim: l * fdim + i_f].set(w.astype(jnp.float32))
        slab = slab.at[:o_f, n_layers * fdim + l].set(b.astype(jnp.float32))

    # Transpose batch onto lanes and zero-pad: (fdim, n_pad).
    x_t = jnp.zeros((fdim, n_pad), jnp.float32)
    x_t = x_t.at[:f_in, :n].set(x.T.astype(jnp.float32))

    grid = (n_pad // tile_n,)
    kernel = functools.partial(mlp_kernel, fdim=fdim, n_layers=n_layers)

    out_t = pl.pallas_call(
        kernel,
        out_shape=jax.ShapeDtypeStruct((fdim, n_pad), jnp.float32),
        grid_spec=pltpu.PrefetchScalarGridSpec(
            num_scalar_prefetch=0,
            grid=grid,
            in_specs=[
                pl.BlockSpec((fdim, tile_n), lambda i: (0, i)),   # activations
                pl.BlockSpec((fdim, cols), lambda i: (0, 0)),     # packed params (grid-invariant)
            ],
            out_specs=pl.BlockSpec((fdim, tile_n), lambda i: (0, i)),
        ),
        compiler_params=pltpu.CompilerParams(
            dimension_semantics=("parallel",),
            # Per-step buffers are a few KiB; cap well under v7x's 64 MiB VMEM.
            vmem_limit_bytes=32 * 1024 * 1024,
        ),
    )(x_t, slab)

    return out_t[:f_out, :n].T


def init_params(key, input_features, output_features, hidden_units=8):
    """PyTorch-style uniform(-1/sqrt(fan_in), 1/sqrt(fan_in)); W kept as (out, in)."""
    dims = [(input_features, hidden_units),
            (hidden_units, hidden_units),
            (hidden_units, hidden_units),
            (hidden_units, hidden_units),
            (hidden_units, hidden_units),
            (hidden_units, output_features)]
    params = []
    for fan_in, fan_out in dims:
        key, kw, kb = jax.random.split(key, 3)
        bound = 1.0 / math.sqrt(fan_in)
        w = jax.random.uniform(kw, (fan_out, fan_in), jnp.float32, -bound, bound)
        b = jax.random.uniform(kb, (fan_out,), jnp.float32, -bound, bound)
        params.append((w, b))
    return params


def reference_forward(x, params):
    h = x
    for (w, b), act in zip(params, _ACTS):
        h = h @ w.T + b
        if act is not None:
            h = act(h)
    return h


if __name__ == "__main__":
    key = jax.random.PRNGKey(0)
    key, kx, kp = jax.random.split(key, 3)

    # Ragged batch (exercises wrapper padding) that still yields a 2-step grid.
    N, F_IN, F_OUT, HIDDEN = 1000, 4, 2, 8
    x = jax.random.normal(kx, (N, F_IN), jnp.float32)
    params = init_params(kp, F_IN, F_OUT, HIDDEN)

    out = regression_non_linear_forward(x, params, tile_n=512)
    out = jax.block_until_ready(out)

    ref = reference_forward(x, params)
    assert out.shape == (N, F_OUT)
    assert jnp.allclose(out, ref, atol=1e-5, rtol=1e-5), "mismatch vs reference"

    print("KERNEL_OK")
</pallas_src>

<mosaic_0001>
module attributes {stable_mosaic.version = 11 : i64} {
  func.func @mlp_kernel(%arg0: i32, %arg1: memref<8x512xf32, #tpu.memory_space<vmem>>, %arg2: memref<8x54xf32, #tpu.memory_space<vmem>>, %arg3: memref<8x512xf32, #tpu.memory_space<vmem>>) attributes {dimension_semantics = [#tpu.dimension_semantics<parallel>], iteration_bounds = array<i64: 2>, scalar_prefetch = 0 : i64, scratch_operands = 0 : i64, tpu.core_type = #tpu.core_type<tc>, window_params = [{transform_indices = @transform_0, window_bounds = array<i64: 8, 512>}, {pipeline_mode = #tpu.pipeline_mode<synchronous>, transform_indices = @transform_1, window_bounds = array<i64: 8, 54>}, {transform_indices = @transform_2, window_bounds = array<i64: 8, 512>}]} {
    %c0 = arith.constant 0 : index
    %c0_0 = arith.constant 0 : index
    %0 = vector.load %arg2[%c0, %c0_0] : memref<8x54xf32, #tpu.memory_space<vmem>>, vector<8x54xf32>
    %c0_1 = arith.constant 0 : index
    %c0_2 = arith.constant 0 : index
    %1 = vector.load %arg1[%c0_1, %c0_2] : memref<8x512xf32, #tpu.memory_space<vmem>>, vector<8x512xf32>
    %2 = vector.extract_strided_slice %0 {offsets = [0, 0], sizes = [8, 8], strides = [1, 1]} : vector<8x54xf32> to vector<8x8xf32>
    %3 = vector.extract_strided_slice %0 {offsets = [0, 48], sizes = [8, 1], strides = [1, 1]} : vector<8x54xf32> to vector<8x1xf32>
    %cst = arith.constant dense<0.000000e+00> : vector<8x512xf32>
    %4 = tpu.matmul %2, %1, %cst {dimension_numbers = #tpu.dot_dimension_numbers<[1], [0], [0], [1], [0, 0, 1, 1], [], []>} : vector<8x8xf32>, vector<8x512xf32>, vector<8x512xf32> -> vector<8x512xf32>
    %5 = vector.broadcast %3 : vector<8x1xf32> to vector<8x512xf32>
    %6 = arith.addf %4, %5 : vector<8x512xf32>
    %cst_3 = arith.constant 5.000000e-01 : f32
    %7 = vector.broadcast %cst_3 : f32 to vector<8x512xf32>
    %8 = arith.mulf %7, %6 : vector<8x512xf32>
    %cst_4 = arith.constant 0.707106769 : f32
    %9 = vector.broadcast %cst_4 : f32 to vector<8x512xf32>
    %10 = arith.mulf %6, %9 : vector<8x512xf32>
    %11 = math.erf %10 : vector<8x512xf32>
    %cst_5 = arith.constant 1.000000e+00 : f32
    %12 = vector.broadcast %cst_5 : f32 to vector<8x512xf32>
    %13 = arith.addf %12, %11 : vector<8x512xf32>
    %14 = arith.mulf %8, %13 : vector<8x512xf32>
    %15 = vector.extract_strided_slice %0 {offsets = [0, 8], sizes = [8, 8], strides = [1, 1]} : vector<8x54xf32> to vector<8x8xf32>
    %16 = vector.extract_strided_slice %0 {offsets = [0, 49], sizes = [8, 1], strides = [1, 1]} : vector<8x54xf32> to vector<8x1xf32>
    %cst_6 = arith.constant dense<0.000000e+00> : vector<8x512xf32>
    %17 = tpu.matmul %15, %14, %cst_6 {dimension_numbers = #tpu.dot_dimension_numbers<[1], [0], [0], [1], [0, 0, 1, 1], [], []>} : vector<8x8xf32>, vector<8x512xf32>, vector<8x512xf32> -> vector<8x512xf32>
    %18 = vector.broadcast %16 : vector<8x1xf32> to vector<8x512xf32>
    %19 = arith.addf %17, %18 : vector<8x512xf32>
    %cst_7 = arith.constant 5.000000e-01 : f32
    %20 = vector.broadcast %cst_7 : f32 to vector<8x512xf32>
    %21 = arith.mulf %20, %19 : vector<8x512xf32>
    %cst_8 = arith.constant 0.707106769 : f32
    %22 = vector.broadcast %cst_8 : f32 to vector<8x512xf32>
    %23 = arith.mulf %19, %22 : vector<8x512xf32>
    %24 = math.erf %23 : vector<8x512xf32>
    %cst_9 = arith.constant 1.000000e+00 : f32
    %25 = vector.broadcast %cst_9 : f32 to vector<8x512xf32>
    %26 = arith.addf %25, %24 : vector<8x512xf32>
    %27 = arith.mulf %21, %26 : vector<8x512xf32>
    %28 = vector.extract_strided_slice %0 {offsets = [0, 16], sizes = [8, 8], strides = [1, 1]} : vector<8x54xf32> to vector<8x8xf32>
    %29 = vector.extract_strided_slice %0 {offsets = [0, 50], sizes = [8, 1], strides = [1, 1]} : vector<8x54xf32> to vector<8x1xf32>
    %cst_10 = arith.constant dense<0.000000e+00> : vector<8x512xf32>
    %30 = tpu.matmul %28, %27, %cst_10 {dimension_numbers = #tpu.dot_dimension_numbers<[1], [0], [0], [1], [0, 0, 1, 1], [], []>} : vector<8x8xf32>, vector<8x512xf32>, vector<8x512xf32> -> vector<8x512xf32>
    %31 = vector.broadcast %29 : vector<8x1xf32> to vector<8x512xf32>
    %32 = arith.addf %30, %31 : vector<8x512xf32>
    %33 = math.absf %32 : vector<8x512xf32>
    %cst_11 = arith.constant 0.000000e+00 : f32
    %34 = vector.broadcast %cst_11 : f32 to vector<8x512xf32>
    %35 = arith.subf %34, %33 : vector<8x512xf32>
    %36 = math.exp %35 : vector<8x512xf32>
    %cst_12 = arith.constant 1.000000e+00 : f32
    %37 = vector.broadcast %cst_12 : f32 to vector<8x512xf32>
    %38 = arith.addf %37, %36 : vector<8x512xf32>
    %cst_13 = arith.constant 1.000000e+00 : f32
    %39 = vector.broadcast %cst_13 : f32 to vector<8x512xf32>
    %40 = arith.divf %39, %38 : vector<8x512xf32>
    %cst_14 = arith.constant 0.000000e+00 : f32
    %41 = vector.broadcast %cst_14 : f32 to vector<8x512xf32>
    %42 = arith.cmpf oge, %32, %41 : vector<8x512xf32>
    %cst_15 = arith.constant 1.000000e+00 : f32
    %43 = vector.broadcast %cst_15 : f32 to vector<8x512xf32>
    %44 = arith.subf %43, %40 : vector<8x512xf32>
    %45 = arith.select %42, %40, %44 : vector<8x512xi1>, vector<8x512xf32>
    %46 = vector.extract_strided_slice %0 {offsets = [0, 24], sizes = [8, 8], strides = [1, 1]} : vector<8x54xf32> to vector<8x8xf32>
    %47 = vector.extract_strided_slice %0 {offsets = [0, 51], sizes = [8, 1], strides = [1, 1]} : vector<8x54xf32> to vector<8x1xf32>
    %cst_16 = arith.constant dense<0.000000e+00> : vector<8x512xf32>
    %48 = tpu.matmul %46, %45, %cst_16 {dimension_numbers = #tpu.dot_dimension_numbers<[1], [0], [0], [1], [0, 0, 1, 1], [], []>} : vector<8x8xf32>, vector<8x512xf32>, vector<8x512xf32> -> vector<8x512xf32>
    %49 = vector.broadcast %47 : vector<8x1xf32> to vector<8x512xf32>
    %50 = arith.addf %48, %49 : vector<8x512xf32>
    %cst_17 = arith.constant 5.000000e-01 : f32
    %51 = vector.broadcast %cst_17 : f32 to vector<8x512xf32>
    %52 = arith.mulf %51, %50 : vector<8x512xf32>
    %cst_18 = arith.constant 0.707106769 : f32
    %53 = vector.broadcast %cst_18 : f32 to vector<8x512xf32>
    %54 = arith.mulf %50, %53 : vector<8x512xf32>
    %55 = math.erf %54 : vector<8x512xf32>
    %cst_19 = arith.constant 1.000000e+00 : f32
    %56 = vector.broadcast %cst_19 : f32 to vector<8x512xf32>
    %57 = arith.addf %56, %55 : vector<8x512xf32>
    %58 = arith.mulf %52, %57 : vector<8x512xf32>
    %59 = vector.extract_strided_slice %0 {offsets = [0, 32], sizes = [8, 8], strides = [1, 1]} : vector<8x54xf32> to vector<8x8xf32>
    %60 = vector.extract_strided_slice %0 {offsets = [0, 52], sizes = [8, 1], strides = [1, 1]} : vector<8x54xf32> to vector<8x1xf32>
    %cst_20 = arith.constant dense<0.000000e+00> : vector<8x512xf32>
    %61 = tpu.matmul %59, %58, %cst_20 {dimension_numbers = #tpu.dot_dimension_numbers<[1], [0], [0], [1], [0, 0, 1, 1], [], []>} : vector<8x8xf32>, vector<8x512xf32>, vector<8x512xf32> -> vector<8x512xf32>
    %62 = vector.broadcast %60 : vector<8x1xf32> to vector<8x512xf32>
    %63 = arith.addf %61, %62 : vector<8x512xf32>
    %cst_21 = arith.constant 5.000000e-01 : f32
    %64 = vector.broadcast %cst_21 : f32 to vector<8x512xf32>
    %65 = arith.mulf %64, %63 : vector<8x512xf32>
    %cst_22 = arith.constant 0.707106769 : f32
    %66 = vector.broadcast %cst_22 : f32 to vector<8x512xf32>
    %67 = arith.mulf %63, %66 : vector<8x512xf32>
    %68 = math.erf %67 : vector<8x512xf32>
    %cst_23 = arith.constant 1.000000e+00 : f32
    %69 = vector.broadcast %cst_23 : f32 to vector<8x512xf32>
    %70 = arith.addf %69, %68 : vector<8x512xf32>
    %71 = arith.mulf %65, %70 : vector<8x512xf32>
    %72 = vector.extract_strided_slice %0 {offsets = [0, 40], sizes = [8, 8], strides = [1, 1]} : vector<8x54xf32> to vector<8x8xf32>
    %73 = vector.extract_strided_slice %0 {offsets = [0, 53], sizes = [8, 1], strides = [1, 1]} : vector<8x54xf32> to vector<8x1xf32>
    %cst_24 = arith.constant dense<0.000000e+00> : vector<8x512xf32>
    %74 = tpu.matmul %72, %71, %cst_24 {dimension_numbers = #tpu.dot_dimension_numbers<[1], [0], [0], [1], [0, 0, 1, 1], [], []>} : vector<8x8xf32>, vector<8x512xf32>, vector<8x512xf32> -> vector<8x512xf32>
    %75 = vector.broadcast %73 : vector<8x1xf32> to vector<8x512xf32>
    %76 = arith.addf %74, %75 : vector<8x512xf32>
    %c0_25 = arith.constant 0 : index
    %c0_26 = arith.constant 0 : index
    %77 = vector.load %arg3[%c0_25, %c0_26] : memref<8x512xf32, #tpu.memory_space<vmem>>, vector<8x512xf32>
    tpu.vector_store %arg3[%c0_25, %c0_26], %76 {strides = array<i32>} : memref<8x512xf32, #tpu.memory_space<vmem>>, vector<8x512xf32>,
    return
  }
  func.func @transform_0(%arg0: i32) -> (i32, i32) {
    %c0_i32 = arith.constant 0 : i32
    %c0_i32_0 = arith.constant 0 : i32
    return %c0_i32, %arg0 : i32, i32
  }
  func.func @transform_1(%arg0: i32) -> (i32, i32) {
    %c0_i32 = arith.constant 0 : i32
    %c0_i32_0 = arith.constant 0 : i32
    %c0_i32_1 = arith.constant 0 : i32
    return %c0_i32, %c0_i32_0 : i32, i32
  }
  func.func @transform_2(%arg0: i32) -> (i32, i32) {
    %c0_i32 = arith.constant 0 : i32
    %c0_i32_0 = arith.constant 0 : i32
    return %c0_i32, %arg0 : i32, i32
  }
}

</mosaic_0001>

<llo_original>
// kernel: tpu_custom_call.1
$region0: #{tpu_custom_call.1}
  #allocation0 [shape = 'u32[]', space=smem, size = 0x4, offset = 0x4, fixed_abs, tag = 'smem constant byte address 0x4 - core index']
  #allocation1 [shape = 'u32[144,128]{1,0:T(1,128)}', space=vmem, size = 0x12000, scoped, tag = 'internal scratch']
  %s0 = inlined_call_operand.hbm [shape: f32[8,1024], index: 0, kind: input, shape index: {}]
  %s1 = inlined_call_operand.hbm [shape: f32[8,54], index: 1, kind: input, shape index: {}]
  %s2 = inlined_call_operand.hbm [shape: f32[8,1024], index: 2, kind: output, shape index: {}]
  %s3 = sld [smem:[#allocation0]]
  $region49: #{tpu_custom_call.1} parent=0
    _
  %s5 = ssub.s32 1, %s3
  %s6 = scalar_select 0, %s5, %s3
  $region1: #{tpu_custom_call.1} parent=0
    #allocation2 [shape = 'u8[32768]{0}', space=vmem, size = 0x8000, scoped, tag = 'input window, operand 0']
    #allocation3 [shape = 's32[2]{0}', space=sflag, size = 0x8, scoped, tag = 'scoped memory for tpu_custom_call.1']
    #allocation4 [shape = 's32[2]{0}', space=sflag, size = 0x8, scoped, tag = 'scoped memory for tpu_custom_call.1']
    #allocation5 [shape = 'u8[4096]{0}', space=vmem, size = 0x1000, scoped, tag = 'input window, operand 1, single buffered']
    #allocation6 [shape = 's32[1]{0}', space=sflag, size = 0x4, scoped, tag = 'scoped memory for tpu_custom_call.1']
    #allocation7 [shape = 'u8[32768]{0}', space=vmem, size = 0x8000, scoped, tag = 'output window, operand 0']
    %7 = vsyncpa [#allocation3], 0
    %s8 = scalar_lea.sflag [#allocation3], 1
    %9 = vsyncpa %s8, 0
    %10 = vsyncpa [#allocation6], 0
    %11 = vsyncpa [#allocation4], 0
    %s12 = scalar_lea.sflag [#allocation4], 1
    %13 = vsyncpa %s12, 0
    loop: start=0, step=1, limit=4
    $region2: #{tpu_custom_call.1} parent=1 // loop_pre_header
      _
    $region3: #{tpu_custom_call.1} parent=1 // loop_header
      %s15 = sphi 0, %s19
      %p16 = scmp.ge.s32.totalorder %s15, 4
      %s25 = sphi 0, %s27
      %s28 = sphi 0, %s25
      %s29 = sphi 0, %s28
      %s45 = sphi 0, %s29
      %s49 = sphi 0, %s49
      %s51 = sphi 0, %s49
      %s52 = sphi 0, %s51
      %s66 = sphi 0, %s52
      %s72 = sphi 0, %s74
      %s75 = sphi 0, %s72
      %s76 = sphi 0, %s75
      %s92 = sphi 0, %s76
    $region4: #{tpu_custom_call.1} parent=1 // loop_header_branch
      %18 = sbr.rel (%p16) target = $region8
    $region5: #{tpu_custom_call.1} parent=1 // loop_body
      %s20 = ssub.s32 %s15, 1
      %s21 = ssub.s32 %s15, 2
      %s22 = sadd.s32 %s15, 1
      %s23 = ssub.s32 %s15, %s22
      %p24 = scmp.eq.s32.totalorder %s23, 0
      %s26 = sadd.s32 %s25, 1
      %s27 = scalar_select %p24, %s25, %s26
      %p30 = pneg %p24
      %p31 = scmp.eq.s32.totalorder %s15, 1
      %p32 = por %p30, %p31
      %p33 = scmp.ne.s32.totalorder %s25, %s28
      %p34 = scmp.eq.s32.totalorder %s15, 0
      %p35 = por %p33, %p34
      %p36 = scmp.ne.s32.totalorder %s25, %s28
      %p37 = scmp.eq.s32.totalorder %s20, 1
      %p38 = por %p36, %p37
      %p39 = scmp.ne.s32.totalorder %s28, %s29
      %p40 = scmp.eq.s32.totalorder %s20, 0
      %p41 = por %p39, %p40
      %p42 = scmp.ne.s32.totalorder %s28, %s29
      %p43 = scmp.eq.s32.totalorder %s21, 1
      %p44 = por %p42, %p43
      %p46 = scmp.ne.s32.totalorder %s29, %s45
      %p47 = scmp.eq.s32.totalorder %s21, 0
      %p48 = por %p46, %p47
      %s50 = sadd.s32 %s49, 1
      %p53 = scmp.eq.s32.totalorder %s15, 1
      %p54 = scmp.ne.s32.totalorder %s49, %s51
      %p55 = scmp.eq.s32.totalorder %s15, 0
      %p56 = por %p54, %p55
      %p57 = scmp.ne.s32.totalorder %s49, %s51
      %p58 = scmp.eq.s32.totalorder %s20, 1
      %p59 = por %p57, %p58
      %p60 = scmp.ne.s32.totalorder %s51, %s52
      %p61 = scmp.eq.s32.totalorder %s20, 0
      %p62 = por %p60, %p61
      %p63 = scmp.ne.s32.totalorder %s51, %s52
      %p64 = scmp.eq.s32.totalorder %s21, 1
      %p65 = por %p63, %p64
      %p67 = scmp.ne.s32.totalorder %s52, %s66
      %p68 = scmp.eq.s32.totalorder %s21, 0
      %p69 = por %p67, %p68
      %s70 = ssub.s32 %s15, %s22
      %p71 = scmp.eq.s32.totalorder %s70, 0
      %s73 = sadd.s32 %s72, 1
      %s74 = scalar_select %p71, %s72, %s73
      %p77 = pneg %p71
      %p78 = scmp.eq.s32.totalorder %s15, 1
      %p79 = por %p77, %p78
      %p80 = scmp.ne.s32.totalorder %s72, %s75
      %p81 = scmp.eq.s32.totalorder %s15, 0
      %p82 = por %p80, %p81
      %p83 = scmp.ne.s32.totalorder %s72, %s75
      %p84 = scmp.eq.s32.totalorder %s20, 1
      %p85 = por %p83, %p84
      %p86 = scmp.ne.s32.totalorder %s75, %s76
      %p87 = scmp.eq.s32.totalorder %s20, 0
      %p88 = por %p86, %p87
      %p89 = scmp.ne.s32.totalorder %s75, %s76
      %p90 = scmp.eq.s32.totalorder %s21, 1
      %p91 = por %p89, %p90
      %p93 = scmp.ne.s32.totalorder %s76, %s92
      %p94 = scmp.eq.s32.totalorder %s21, 0
      %p95 = por %p93, %p94
      %p96 = scmp.le.s32.totalorder 1, %s15
      %p97 = scmp.lt.s32.totalorder %s15, 3
      %p98 = pnand %p96, %p97
      %p99 = pneg %p98
      // Predicated region
      $region9: #{tpu_custom_call.1} parent=5 // pred_check
        _
      $region10: #{tpu_custom_call.1} parent=5 // pred_check_branch
        %101 = sbr.rel (%p98) target = $region12
      $region11: #{tpu_custom_call.1} parent=5 // pred_region
        %s102 = ssub.s32 %s15, 1
        // Predicated region
        $region13: #{tpu_custom_call.1} parent=11 // pred_check
          %p103 = pneg %p62
        $region14: #{tpu_custom_call.1} parent=11 // pred_check_branch
          %105 = sbr.rel (%p103) target = $region16
        $region15: #{tpu_custom_call.1} parent=11 // pred_region
          %s107 = ssub.s32 128, 128
          %108 = vsyncadd [#allocation6], %s107
          %s110 = sshll.u32 [#allocation5], 4
          %s111 = int_to_ptr.vmem [resolvable:$true] %s110
          %113 = dma.hbm_to_vmem [thread:$0]  %s1, 128, %s111, [#allocation6]
        $region16: #{tpu_custom_call.1} parent=11 // pred_fallthru
          _
      $region12: #{tpu_custom_call.1} parent=5 // pred_fallthru
        _
      %p114 = scmp.lt.s32.totalorder %s15, 2
      // Predicated region
      $region17: #{tpu_custom_call.1} parent=5 // pred_check
        %p115 = pneg %p114
      $region18: #{tpu_custom_call.1} parent=5 // pred_check_branch
        %117 = sbr.rel (%p115) target = $region20
      $region19: #{tpu_custom_call.1} parent=5 // pred_region
        // Predicated region
        $region21: #{tpu_custom_call.1} parent=19 // pred_check
          %p118 = pneg %p35
        $region22: #{tpu_custom_call.1} parent=19 // pred_check_branch
          %120 = sbr.rel (%p118) target = $region24
        $region23: #{tpu_custom_call.1} parent=19 // pred_region
          %s121 = sand.u32 %s25, 1
          %s122 = scalar_lea.sflag [#allocation3], %s121
          %s123 = sand.u32 %s25, 1
          %s124 = smul.addr %s123, 32
          %s125 = scalar_lea.vmem [#allocation2], %s124
          %s126 = smul.u32 4, %s15
          %s128 = ssub.s32 512, 512
          %129 = vsyncadd %s122, %s128
          %s130 = smul.addr %s126, 128
          %s131 = scalar_lea.hbm %s0, %s130
          %s133 = sshll.u32 %s125, 4
          %s134 = int_to_ptr.vmem [resolvable:$true] %s133
          %136 = dma.hbm_to_vmem [thread:$0]  %s131, 512, %s134, %s122
        $region24: #{tpu_custom_call.1} parent=19 // pred_fallthru
          _
      $region20: #{tpu_custom_call.1} parent=5 // pred_fallthru
        _
      %p137 = scmp.le.s32.totalorder 1, %s15
      %p138 = scmp.lt.s32.totalorder %s15, 3
      %p139 = pnand %p137, %p138
      %p140 = pneg %p139
      // Predicated region
      $region25: #{tpu_custom_call.1} parent=5 // pred_check
        _
      $region26: #{tpu_custom_call.1} parent=5 // pred_check_branch
        %142 = sbr.rel (%p139) target = $region28
      $region27: #{tpu_custom_call.1} parent=5 // pred_region
        %s143 = ssub.s32 %s15, 1
        %s144 = sand.u32 %s28, 1
        %s145 = scalar_lea.sflag [#allocation3], %s144
        %s146 = sand.u32 %s28, 1
        %s147 = smul.addr %s146, 32
        %s148 = scalar_lea.vmem [#allocation2], %s147
        // Predicated region
        $region29: #{tpu_custom_call.1} parent=27 // pred_check
          %p149 = pneg %p41
        $region30: #{tpu_custom_call.1} parent=27 // pred_check_branch
          %151 = sbr.rel (%p149) target = $region32
        $region31: #{tpu_custom_call.1} parent=27 // pred_region
          %152 = dma.done %s145, 512
        $region32: #{tpu_custom_call.1} parent=27 // pred_fallthru
          _
        // Predicated region
        $region33: #{tpu_custom_call.1} parent=27 // pred_check
          %p153 = pneg %p62
        $region34: #{tpu_custom_call.1} parent=27 // pred_check_branch
          %155 = sbr.rel (%p153) target = $region36
        $region35: #{tpu_custom_call.1} parent=27 // pred_region
          %156 = dma.done [#allocation6], 128
        $region36: #{tpu_custom_call.1} parent=27 // pred_fallthru
          _
        %s157 = sand.u32 %s28, 1
        %s158 = scalar_lea.sflag [#allocation3], %s157
        %s159 = sand.u32 %s28, 1
        %s160 = smul.addr %s159, 32
        %s161 = scalar_lea.vmem [#allocation2], %s160
        %p162 = pneg %p41
        %p163 = pneg %p38
        %p164 = pneg %p62
        %p165 = pneg %p59
        %p166 = pneg %p88
        %p167 = pneg %p85
        %s168 = sand.u32 %s75, 1
        %s169 = scalar_lea.sflag [#allocation4], %s168
        %s170 = sand.u32 %s75, 1
        %s171 = smul.addr %s170, 32
        %s172 = scalar_lea.vmem [#allocation7], %s171
        %s173 = smul.u32 4, %s20
        %s174 = smul.u32 4, %s20
        %v175 = vld [vmem:[#allocation5] sm:$0xff]
        %v176 = vld [vmem:[%s148] sm:$0xff]
        %v177 = vld [vmem:[%s148 + $0x8] sm:$0xff]
        %v178 = vld [vmem:[%s148 + $0x10] sm:$0xff]
        %v179 = vld [vmem:[%s148 + $0x18] sm:$0xff]
        %181 = vset.pattern.permute.xlu0 48
        %182 = vperm.xlu0 %181, %v175
        %v183 = vpop.permute.xlu0 %182
        %vm185 = vcmask 64512
        %v186 = vsel %vm185, %v175, 0
        %188 = vmatprep.subr.mxu0 0.0
        %189 = vmatpush1.msra.mxu0 0.0
        %190 = vmatprep.subr.mxu0 0.0
        %191 = vmatpush1.msra.mxu0 0.0
        %192 = vmatprep.subr.mxu0 0.0
        %193 = vmatpush1.msra.mxu0 0.0
        %194 = vmatprep.subr.mxu0 0.0
        %195 = vmatpush1.msra.mxu0 0.0
        %196 = vmatprep.subr.mxu0 0.0
        %197 = vmatpush1.msra.mxu0 0.0
        %198 = vmatprep.subr.mxu0 0.0
        %199 = vmatpush1.msra.mxu0 0.0
        %200 = vmatprep.subr.mxu0 0.0
        %201 = vmatpush1.msra.mxu0 0.0
        %202 = vmatprep.subr.mxu0 0.0
        %203 = vmatpush1.msra.mxu0 0.0
        %204 = vmatprep.subr.mxu0 0.0
        %205 = vmatpush1.msra.mxu0 0.0
        %206 = vmatprep.subr.mxu0 0.0
        %207 = vmatpush1.msra.mxu0 0.0
        %208 = vmatprep.subr.mxu0 0.0
        %209 = vmatpush1.msra.mxu0 0.0
        %210 = vmatprep.subr.mxu0 0.0
        %211 = vmatpush1.msra.mxu0 0.0
        %212 = vmatprep.subr.mxu0 0.0
        %213 = vmatpush1.msra.mxu0 0.0
        %214 = vmatprep.subr.mxu0 0.0
        %215 = vmatpush1.msra.mxu0 0.0
        %216 = vmatprep.subr.mxu0 0.0
        %217 = vmatpush1.msra.mxu0 0.0
        %218 = vmatprep.subr.mxu0 %v177
        %219 = vmatpush1.msra.mxu0 %v176
        %220 = vmatprep.subr.mxu0 0.0
        %221 = vmatpush2.msra.mxu0 0.0
        %222 = vmatprep.subr.mxu0 0.0
        %223 = vmatpush2.msra.mxu0 0.0
        %224 = vmatprep.subr.mxu0 0.0
        %225 = vmatpush2.msra.mxu0 0.0
        %226 = vmatprep.subr.mxu0 0.0
        %227 = vmatpush2.msra.mxu0 0.0
        %228 = vmatprep.subr.mxu0 0.0
        %229 = vmatpush2.msra.mxu0 0.0
        %230 = vmatprep.subr.mxu0 0.0
        %231 = vmatpush2.msra.mxu0 0.0
        %232 = vmatprep.subr.mxu0 0.0
        %233 = vmatpush2.msra.mxu0 0.0
        %234 = vmatprep.subr.mxu0 0.0
        %235 = vmatpush2.msra.mxu0 0.0
        %236 = vmatprep.subr.mxu0 0.0
        %237 = vmatpush2.msra.mxu0 0.0
        %238 = vmatprep.subr.mxu0 0.0
        %239 = vmatpush2.msra.mxu0 0.0
        %240 = vmatprep.subr.mxu0 0.0
        %241 = vmatpush2.msra.mxu0 0.0
        %242 = vmatprep.subr.mxu0 0.0
        %243 = vmatpush2.msra.mxu0 0.0
        %244 = vmatprep.subr.mxu0 0.0
        %245 = vmatpush2.msra.mxu0 0.0
        %246 = vmatprep.subr.mxu0 0.0
        %247 = vmatpush2.msra.mxu0 0.0
        %248 = vmatprep.subr.mxu0 0.0
        %249 = vmatpush2.msra.mxu0 0.0
        %250 = vmatprep.subr.mxu0 0.0
        %251 = vmatpush2.msra.mxu0 0.0
        %252 = vmatprep.mubr.f32.mxu0 0.0
        %253 = vmatmul.mubr.f32.gmra.mxu0 %v186
        %v254 = vpop.f32.mrf.mxu0
        %v255 = vadd.f32 %v183, %v254
        %v256 = vpop.f32.mrf.mxu0
        %v257 = vadd.f32 %v183, %v256
        %258 = vdwg.mxu0
        %259 = vmatprep.subr.mxu0 0.0
        %260 = vmatpush1.msra.mxu0 0.0
        %261 = vmatprep.subr.mxu0 0.0
        %262 = vmatpush1.msra.mxu0 0.0
        %263 = vmatprep.subr.mxu0 0.0
        %264 = vmatpush1.msra.mxu0 0.0
        %265 = vmatprep.subr.mxu0 0.0
        %266 = vmatpush1.msra.mxu0 0.0
        %267 = vmatprep.subr.mxu0 0.0
        %268 = vmatpush1.msra.mxu0 0.0
        %269 = vmatprep.subr.mxu0 0.0
        %270 = vmatpush1.msra.mxu0 0.0
        %271 = vmatprep.subr.mxu0 0.0
        %272 = vmatpush1.msra.mxu0 0.0
        %273 = vmatprep.subr.mxu0 0.0
        %274 = vmatpush1.msra.mxu0 0.0
        %275 = vmatprep.subr.mxu0 0.0
        %276 = vmatpush1.msra.mxu0 0.0
        %277 = vmatprep.subr.mxu0 0.0
        %278 = vmatpush1.msra.mxu0 0.0
        %279 = vmatprep.subr.mxu0 0.0
        %280 = vmatpush1.msra.mxu0 0.0
        %281 = vmatprep.subr.mxu0 0.0
        %282 = vmatpush1.msra.mxu0 0.0
        %283 = vmatprep.subr.mxu0 0.0
        %284 = vmatpush1.msra.mxu0 0.0
        %285 = vmatprep.subr.mxu0 0.0
        %286 = vmatpush1.msra.mxu0 0.0
        %287 = vmatprep.subr.mxu0 0.0
        %288 = vmatpush1.msra.mxu0 0.0
        %289 = vmatprep.subr.mxu0 %v179
        %290 = vmatpush1.msra.mxu0 %v178
        %291 = vmatprep.subr.mxu0 0.0
        %292 = vmatpush2.msra.mxu0 0.0
        %293 = vmatprep.subr.mxu0 0.0
        %294 = vmatpush2.msra.mxu0 0.0
        %295 = vmatprep.subr.mxu0 0.0
        %296 = vmatpush2.msra.mxu0 0.0
        %297 = vmatprep.subr.mxu0 0.0
        %298 = vmatpush2.msra.mxu0 0.0
        %299 = vmatprep.subr.mxu0 0.0
        %300 = vmatpush2.msra.mxu0 0.0
        %301 = vmatprep.subr.mxu0 0.0
        %302 = vmatpush2.msra.mxu0 0.0
        %303 = vmatprep.subr.mxu0 0.0
        %304 = vmatpush2.msra.mxu0 0.0
        %305 = vmatprep.subr.mxu0 0.0
        %306 = vmatpush2.msra.mxu0 0.0
        %307 = vmatprep.subr.mxu0 0.0
        %308 = vmatpush2.msra.mxu0 0.0
        %309 = vmatprep.subr.mxu0 0.0
        %310 = vmatpush2.msra.mxu0 0.0
        %311 = vmatprep.subr.mxu0 0.0
        %312 = vmatpush2.msra.mxu0 0.0
        %313 = vmatprep.subr.mxu0 0.0
        %314 = vmatpush2.msra.mxu0 0.0
        %315 = vmatprep.subr.mxu0 0.0
        %316 = vmatpush2.msra.mxu0 0.0
        %317 = vmatprep.subr.mxu0 0.0
        %318 = vmatpush2.msra.mxu0 0.0
        %319 = vmatprep.subr.mxu0 0.0
        %320 = vmatpush2.msra.mxu0 0.0
        %321 = vmatprep.subr.mxu0 0.0
        %322 = vmatpush2.msra.mxu0 0.0
        %323 = vmatprep.mubr.f32.mxu0 0.0
        %324 = vmatmul.mubr.f32.gmra.mxu0 %v186
        %v325 = vpop.f32.mrf.mxu0
        %v326 = vadd.f32 %v183, %v325
        %v327 = vpop.f32.mrf.mxu0
        %v328 = vadd.f32 %v183, %v327
        %329 = vdwg.mxu0
        %v330 = vmul.f32 %v255, 0.5
        %v331 = vmul.f32 %v257, 0.5
        %v332 = vmul.f32 %v326, 0.5
        %v333 = vmul.f32 %v328, 0.5
        %v334 = vmul.f32 %v255, 0.70710677
        %v335 = vmul.f32 %v257, 0.70710677
        %v336 = vmul.f32 %v326, 0.70710677
        %v337 = vmul.f32 %v328, 0.70710677
        %v338 = verf.f32.pop %v334
        %v339 = verf.f32.pop %v335
        %v340 = verf.f32.pop %v336
        %v341 = verf.f32.pop %v337
        %v342 = vadd.f32 %v338, 1.0
        %v343 = vadd.f32 %v339, 1.0
        %v344 = vadd.f32 %v340, 1.0
        %v345 = vadd.f32 %v341, 1.0
        %v346 = vmul.f32 %v330, %v342
        %v347 = vmul.f32 %v331, %v343
        %v348 = vmul.f32 %v332, %v344
        %v349 = vmul.f32 %v333, %v345
        %350 = vset.pattern.permute.xlu0 49
        %351 = vperm.xlu0 %350, %v175
        %v352 = vpop.permute.xlu0 %351
        %354 = vrot.lane.b32.xlu0 %v175, 120
        %v355 = vpop.permute.xlu0 %354
        %v356 = vsel %vm185, %v355, 0
        %358 = vmatprep.subr.mxu0 0.0
        %359 = vmatpush1.msra.mxu0 0.0
        %360 = vmatprep.subr.mxu0 0.0
        %361 = vmatpush1.msra.mxu0 0.0
        %362 = vmatprep.subr.mxu0 0.0
        %363 = vmatpush1.msra.mxu0 0.0
        %364 = vmatprep.subr.mxu0 0.0
        %365 = vmatpush1.msra.mxu0 0.0
        %366 = vmatprep.subr.mxu0 0.0
        %367 = vmatpush1.msra.mxu0 0.0
        %368 = vmatprep.subr.mxu0 0.0
        %369 = vmatpush1.msra.mxu0 0.0
        %370 = vmatprep.subr.mxu0 0.0
        %371 = vmatpush1.msra.mxu0 0.0
        %372 = vmatprep.subr.mxu0 0.0
        %373 = vmatpush1.msra.mxu0 0.0
        %374 = vmatprep.subr.mxu0 0.0
        %375 = vmatpush1.msra.mxu0 0.0
        %376 = vmatprep.subr.mxu0 0.0
        %377 = vmatpush1.msra.mxu0 0.0
        %378 = vmatprep.subr.mxu0 0.0
        %379 = vmatpush1.msra.mxu0 0.0
        %380 = vmatprep.subr.mxu0 0.0
        %381 = vmatpush1.msra.mxu0 0.0
        %382 = vmatprep.subr.mxu0 0.0
        %383 = vmatpush1.msra.mxu0 0.0
        %384 = vmatprep.subr.mxu0 0.0
        %385 = vmatpush1.msra.mxu0 0.0
        %386 = vmatprep.subr.mxu0 0.0
        %387 = vmatpush1.msra.mxu0 0.0
        %388 = vmatprep.subr.mxu0 %v347
        %389 = vmatpush1.msra.mxu0 %v346
        %390 = vmatprep.subr.mxu0 0.0
        %391 = vmatpush2.msra.mxu0 0.0
        %392 = vmatprep.subr.mxu0 0.0
        %393 = vmatpush2.msra.mxu0 0.0
        %394 = vmatprep.subr.mxu0 0.0
        %395 = vmatpush2.msra.mxu0 0.0
        %396 = vmatprep.subr.mxu0 0.0
        %397 = vmatpush2.msra.mxu0 0.0
        %398 = vmatprep.subr.mxu0 0.0
        %399 = vmatpush2.msra.mxu0 0.0
        %400 = vmatprep.subr.mxu0 0.0
        %401 = vmatpush2.msra.mxu0 0.0
        %402 = vmatprep.subr.mxu0 0.0
        %403 = vmatpush2.msra.mxu0 0.0
        %404 = vmatprep.subr.mxu0 0.0
        %405 = vmatpush2.msra.mxu0 0.0
        %406 = vmatprep.subr.mxu0 0.0
        %407 = vmatpush2.msra.mxu0 0.0
        %408 = vmatprep.subr.mxu0 0.0
        %409 = vmatpush2.msra.mxu0 0.0
        %410 = vmatprep.subr.mxu0 0.0
        %411 = vmatpush2.msra.mxu0 0.0
        %412 = vmatprep.subr.mxu0 0.0
        %413 = vmatpush2.msra.mxu0 0.0
        %414 = vmatprep.subr.mxu0 0.0
        %415 = vmatpush2.msra.mxu0 0.0
        %416 = vmatprep.subr.mxu0 0.0
        %417 = vmatpush2.msra.mxu0 0.0
        %418 = vmatprep.subr.mxu0 0.0
        %419 = vmatpush2.msra.mxu0 0.0
        %420 = vmatprep.subr.mxu0 0.0
        %421 = vmatpush2.msra.mxu0 0.0
        %422 = vmatprep.mubr.f32.mxu0 0.0
        %423 = vmatmul.mubr.f32.gmra.mxu0 %v356
        %v424 = vpop.f32.mrf.mxu0
        %v425 = vadd.f32 %v352, %v424
        %v426 = vpop.f32.mrf.mxu0
        %v427 = vadd.f32 %v352, %v426
        %428 = vdwg.mxu0
        %429 = vmatprep.subr.mxu0 0.0
        %430 = vmatpush1.msra.mxu0 0.0
        %431 = vmatprep.subr.mxu0 0.0
        %432 = vmatpush1.msra.mxu0 0.0
        %433 = vmatprep.subr.mxu0 0.0
        %434 = vmatpush1.msra.mxu0 0.0
        %435 = vmatprep.subr.mxu0 0.0
        %436 = vmatpush1.msra.mxu0 0.0
        %437 = vmatprep.subr.mxu0 0.0
        %438 = vmatpush1.msra.mxu0 0.0
        %439 = vmatprep.subr.mxu0 0.0
        %440 = vmatpush1.msra.mxu0 0.0
        %441 = vmatprep.subr.mxu0 0.0
        %442 = vmatpush1.msra.mxu0 0.0
        %443 = vmatprep.subr.mxu0 0.0
        %444 = vmatpush1.msra.mxu0 0.0
        %445 = vmatprep.subr.mxu0 0.0
        %446 = vmatpush1.msra.mxu0 0.0
        %447 = vmatprep.subr.mxu0 0.0
        %448 = vmatpush1.msra.mxu0 0.0
        %449 = vmatprep.subr.mxu0 0.0
        %450 = vmatpush1.msra.mxu0 0.0
        %451 = vmatprep.subr.mxu0 0.0
        %452 = vmatpush1.msra.mxu0 0.0
        %453 = vmatprep.subr.mxu0 0.0
        %454 = vmatpush1.msra.mxu0 0.0
        %455 = vmatprep.subr.mxu0 0.0
        %456 = vmatpush1.msra.mxu0 0.0
        %457 = vmatprep.subr.mxu0 0.0
        %458 = vmatpush1.msra.mxu0 0.0
        %459 = vmatprep.subr.mxu0 %v349
        %460 = vmatpush1.msra.mxu0 %v348
        %461 = vmatprep.subr.mxu0 0.0
        %462 = vmatpush2.msra.mxu0 0.0
        %463 = vmatprep.subr.mxu0 0.0
        %464 = vmatpush2.msra.mxu0 0.0
        %465 = vmatprep.subr.mxu0 0.0
        %466 = vmatpush2.msra.mxu0 0.0
        %467 = vmatprep.subr.mxu0 0.0
        %468 = vmatpush2.msra.mxu0 0.0
        %469 = vmatprep.subr.mxu0 0.0
        %470 = vmatpush2.msra.mxu0 0.0
        %471 = vmatprep.subr.mxu0 0.0
        %472 = vmatpush2.msra.mxu0 0.0
        %473 = vmatprep.subr.mxu0 0.0
        %474 = vmatpush2.msra.mxu0 0.0
        %475 = vmatprep.subr.mxu0 0.0
        %476 = vmatpush2.msra.mxu0 0.0
        %477 = vmatprep.subr.mxu0 0.0
        %478 = vmatpush2.msra.mxu0 0.0
        %479 = vmatprep.subr.mxu0 0.0
        %480 = vmatpush2.msra.mxu0 0.0
        %481 = vmatprep.subr.mxu0 0.0
        %482 = vmatpush2.msra.mxu0 0.0
        %483 = vmatprep.subr.mxu0 0.0
        %484 = vmatpush2.msra.mxu0 0.0
        %485 = vmatprep.subr.mxu0 0.0
        %486 = vmatpush2.msra.mxu0 0.0
        %487 = vmatprep.subr.mxu0 0.0
        %488 = vmatpush2.msra.mxu0 0.0
        %489 = vmatprep.subr.mxu0 0.0
        %490 = vmatpush2.msra.mxu0 0.0
        %491 = vmatprep.subr.mxu0 0.0
        %492 = vmatpush2.msra.mxu0 0.0
        %493 = vmatprep.mubr.f32.mxu0 0.0
        %494 = vmatmul.mubr.f32.gmra.mxu0 %v356
        %v495 = vpop.f32.mrf.mxu0
        %v496 = vadd.f32 %v352, %v495
        %v497 = vpop.f32.mrf.mxu0
        %v498 = vadd.f32 %v352, %v497
        %499 = vdwg.mxu0
        %v500 = vmul.f32 %v425, 0.5
        %v501 = vmul.f32 %v427, 0.5
        %v502 = vmul.f32 %v496, 0.5
        %v503 = vmul.f32 %v498, 0.5
        %v504 = vmul.f32 %v425, 0.70710677
        %v505 = vmul.f32 %v427, 0.70710677
        %v506 = vmul.f32 %v496, 0.70710677
        %v507 = vmul.f32 %v498, 0.70710677
        %v508 = verf.f32.pop %v504
        %v509 = verf.f32.pop %v505
        %v510 = verf.f32.pop %v506
        %v511 = verf.f32.pop %v507
        %v512 = vadd.f32 %v508, 1.0
        %v513 = vadd.f32 %v509, 1.0
        %v514 = vadd.f32 %v510, 1.0
        %v515 = vadd.f32 %v511, 1.0
        %v516 = vmul.f32 %v500, %v512
        %v517 = vmul.f32 %v501, %v513
        %v518 = vmul.f32 %v502, %v514
        %v519 = vmul.f32 %v503, %v515
        %520 = vset.pattern.permute.xlu0 50
        %521 = vperm.xlu0 %520, %v175
        %v522 = vpop.permute.xlu0 %521
        %524 = vrot.lane.b32.xlu0 %v175, 112
        %v525 = vpop.permute.xlu0 %524
        %v526 = vsel %vm185, %v525, 0
        %528 = vmatprep.subr.mxu0 0.0
        %529 = vmatpush1.msra.mxu0 0.0
        %530 = vmatprep.subr.mxu0 0.0
        %531 = vmatpush1.msra.mxu0 0.0
        %532 = vmatprep.subr.mxu0 0.0
        %533 = vmatpush1.msra.mxu0 0.0
        %534 = vmatprep.subr.mxu0 0.0
        %535 = vmatpush1.msra.mxu0 0.0
        %536 = vmatprep.subr.mxu0 0.0
        %537 = vmatpush1.msra.mxu0 0.0
        %538 = vmatprep.subr.mxu0 0.0
        %539 = vmatpush1.msra.mxu0 0.0
        %540 = vmatprep.subr.mxu0 0.0
        %541 = vmatpush1.msra.mxu0 0.0
        %542 = vmatprep.subr.mxu0 0.0
        %543 = vmatpush1.msra.mxu0 0.0
        %544 = vmatprep.subr.mxu0 0.0
        %545 = vmatpush1.msra.mxu0 0.0
        %546 = vmatprep.subr.mxu0 0.0
        %547 = vmatpush1.msra.mxu0 0.0
        %548 = vmatprep.subr.mxu0 0.0
        %549 = vmatpush1.msra.mxu0 0.0
        %550 = vmatprep.subr.mxu0 0.0
        %551 = vmatpush1.msra.mxu0 0.0
        %552 = vmatprep.subr.mxu0 0.0
        %553 = vmatpush1.msra.mxu0 0.0
        %554 = vmatprep.subr.mxu0 0.0
        %555 = vmatpush1.msra.mxu0 0.0
        %556 = vmatprep.subr.mxu0 0.0
        %557 = vmatpush1.msra.mxu0 0.0
        %558 = vmatprep.subr.mxu0 %v517
        %559 = vmatpush1.msra.mxu0 %v516
        %560 = vmatprep.subr.mxu0 0.0
        %561 = vmatpush2.msra.mxu0 0.0
        %562 = vmatprep.subr.mxu0 0.0
        %563 = vmatpush2.msra.mxu0 0.0
        %564 = vmatprep.subr.mxu0 0.0
        %565 = vmatpush2.msra.mxu0 0.0
        %566 = vmatprep.subr.mxu0 0.0
        %567 = vmatpush2.msra.mxu0 0.0
        %568 = vmatprep.subr.mxu0 0.0
        %569 = vmatpush2.msra.mxu0 0.0
        %570 = vmatprep.subr.mxu0 0.0
        %571 = vmatpush2.msra.mxu0 0.0
        %572 = vmatprep.subr.mxu0 0.0
        %573 = vmatpush2.msra.mxu0 0.0
        %574 = vmatprep.subr.mxu0 0.0
        %575 = vmatpush2.msra.mxu0 0.0
        %576 = vmatprep.subr.mxu0 0.0
        %577 = vmatpush2.msra.mxu0 0.0
        %578 = vmatprep.subr.mxu0 0.0
        %579 = vmatpush2.msra.mxu0 0.0
        %580 = vmatprep.subr.mxu0 0.0
        %581 = vmatpush2.msra.mxu0 0.0
        %582 = vmatprep.subr.mxu0 0.0
        %583 = vmatpush2.msra.mxu0 0.0
        %584 = vmatprep.subr.mxu0 0.0
        %585 = vmatpush2.msra.mxu0 0.0
        %586 = vmatprep.subr.mxu0 0.0
        %587 = vmatpush2.msra.mxu0 0.0
        %588 = vmatprep.subr.mxu0 0.0
        %589 = vmatpush2.msra.mxu0 0.0
        %590 = vmatprep.subr.mxu0 0.0
        %591 = vmatpush2.msra.mxu0 0.0
        %592 = vmatprep.mubr.f32.mxu0 0.0
        %593 = vmatmul.mubr.f32.gmra.mxu0 %v526
        %v594 = vpop.f32.mrf.mxu0
        %v595 = vadd.f32 %v522, %v594
        %v596 = vpop.f32.mrf.mxu0
        %v597 = vadd.f32 %v522, %v596
        %598 = vdwg.mxu0
        %599 = vmatprep.subr.mxu0 0.0
        %600 = vmatpush1.msra.mxu0 0.0
        %601 = vmatprep.subr.mxu0 0.0
        %602 = vmatpush1.msra.mxu0 0.0
        %603 = vmatprep.subr.mxu0 0.0
        %604 = vmatpush1.msra.mxu0 0.0
        %605 = vmatprep.subr.mxu0 0.0
        %606 = vmatpush1.msra.mxu0 0.0
        %607 = vmatprep.subr.mxu0 0.0
        %608 = vmatpush1.msra.mxu0 0.0
        %609 = vmatprep.subr.mxu0 0.0
        %610 = vmatpush1.msra.mxu0 0.0
        %611 = vmatprep.subr.mxu0 0.0
        %612 = vmatpush1.msra.mxu0 0.0
        %613 = vmatprep.subr.mxu0 0.0
        %614 = vmatpush1.msra.mxu0 0.0
        %615 = vmatprep.subr.mxu0 0.0
        %616 = vmatpush1.msra.mxu0 0.0
        %617 = vmatprep.subr.mxu0 0.0
        %618 = vmatpush1.msra.mxu0 0.0
        %619 = vmatprep.subr.mxu0 0.0
        %620 = vmatpush1.msra.mxu0 0.0
        %621 = vmatprep.subr.mxu0 0.0
        %622 = vmatpush1.msra.mxu0 0.0
        %623 = vmatprep.subr.mxu0 0.0
        %624 = vmatpush1.msra.mxu0 0.0
        %625 = vmatprep.subr.mxu0 0.0
        %626 = vmatpush1.msra.mxu0 0.0
        %627 = vmatprep.subr.mxu0 0.0
        %628 = vmatpush1.msra.mxu0 0.0
        %629 = vmatprep.subr.mxu0 %v519
        %630 = vmatpush1.msra.mxu0 %v518
        %631 = vmatprep.subr.mxu0 0.0
        %632 = vmatpush2.msra.mxu0 0.0
        %633 = vmatprep.subr.mxu0 0.0
        %634 = vmatpush2.msra.mxu0 0.0
        %635 = vmatprep.subr.mxu0 0.0
        %636 = vmatpush2.msra.mxu0 0.0
        %637 = vmatprep.subr.mxu0 0.0
        %638 = vmatpush2.msra.mxu0 0.0
        %639 = vmatprep.subr.mxu0 0.0
        %640 = vmatpush2.msra.mxu0 0.0
        %641 = vmatprep.subr.mxu0 0.0
        %642 = vmatpush2.msra.mxu0 0.0
        %643 = vmatprep.subr.mxu0 0.0
        %644 = vmatpush2.msra.mxu0 0.0
        %645 = vmatprep.subr.mxu0 0.0
        %646 = vmatpush2.msra.mxu0 0.0
        %647 = vmatprep.subr.mxu0 0.0
        %648 = vmatpush2.msra.mxu0 0.0
        %649 = vmatprep.subr.mxu0 0.0
        %650 = vmatpush2.msra.mxu0 0.0
        %651 = vmatprep.subr.mxu0 0.0
        %652 = vmatpush2.msra.mxu0 0.0
        %653 = vmatprep.subr.mxu0 0.0
        %654 = vmatpush2.msra.mxu0 0.0
        %655 = vmatprep.subr.mxu0 0.0
        %656 = vmatpush2.msra.mxu0 0.0
        %657 = vmatprep.subr.mxu0 0.0
        %658 = vmatpush2.msra.mxu0 0.0
        %659 = vmatprep.subr.mxu0 0.0
        %660 = vmatpush2.msra.mxu0 0.0
        %661 = vmatprep.subr.mxu0 0.0
        %662 = vmatpush2.msra.mxu0 0.0
        %663 = vmatprep.mubr.f32.mxu0 0.0
        %664 = vmatmul.mubr.f32.gmra.mxu0 %v526
        %v665 = vpop.f32.mrf.mxu0
        %v666 = vadd.f32 %v522, %v665
        %v667 = vpop.f32.mrf.mxu0
        %v668 = vadd.f32 %v522, %v667
        %669 = vdwg.mxu0
        %v670 = vand.u32 2147483647, %v595
        %v671 = vand.u32 2147483647, %v597
        %v672 = vand.u32 2147483647, %v666
        %v673 = vand.u32 2147483647, %v668
        %v674 = vsub.f32 0.0, %v670
        %v675 = vsub.f32 0.0, %v671
        %v676 = vsub.f32 0.0, %v672
        %v677 = vsub.f32 0.0, %v673
        %v678 = vmul.f32 %v674, 1.442695
        %v679 = vpow.pop %v678
        %v680 = vmul.f32 %v675, 1.442695
        %v681 = vpow.pop %v680
        %v682 = vmul.f32 %v676, 1.442695
        %v683 = vpow.pop %v682
        %v684 = vmul.f32 %v677, 1.442695
        %v685 = vpow.pop %v684
        %v686 = vadd.f32 %v679, 1.0
        %v687 = vadd.f32 %v681, 1.0
        %v688 = vadd.f32 %v683, 1.0
        %v689 = vadd.f32 %v685, 1.0
        %v690 = vrcp.pop %v686
        %v691 = vmul.f32 1.0, %v690
        %v692 = vrcp.pop %v687
        %v693 = vmul.f32 1.0, %v692
        %v694 = vrcp.pop %v688
        %v695 = vmul.f32 1.0, %v694
        %v696 = vrcp.pop %v689
        %v697 = vmul.f32 1.0, %v696
        %vm698 = vcmp.ge.f32.partialorder %v595, 0.0
        %vm699 = vcmp.ge.f32.partialorder %v597, 0.0
        %vm700 = vcmp.ge.f32.partialorder %v666, 0.0
        %vm701 = vcmp.ge.f32.partialorder %v668, 0.0
        %v702 = vsub.f32 1.0, %v691
        %v703 = vsub.f32 1.0, %v693
        %v704 = vsub.f32 1.0, %v695
        %v705 = vsub.f32 1.0, %v697
        %v706 = vsel %vm698, %v691, %v702
        %v707 = vsel %vm699, %v693, %v703
        %v708 = vsel %vm700, %v695, %v704
        %v709 = vsel %vm701, %v697, %v705
        %710 = vset.pattern.permute.xlu0 51
        %711 = vperm.xlu0 %710, %v175
        %v712 = vpop.permute.xlu0 %711
        %714 = vrot.lane.b32.xlu0 %v175, 104
        %v715 = vpop.permute.xlu0 %714
        %v716 = vsel %vm185, %v715, 0
        %718 = vmatprep.subr.mxu0 0.0
        %719 = vmatpush1.msra.mxu0 0.0
        %720 = vmatprep.subr.mxu0 0.0
        %721 = vmatpush1.msra.mxu0 0.0
        %722 = vmatprep.subr.mxu0 0.0
        %723 = vmatpush1.msra.mxu0 0.0
        %724 = vmatprep.subr.mxu0 0.0
        %725 = vmatpush1.msra.mxu0 0.0
        %726 = vmatprep.subr.mxu0 0.0
        %727 = vmatpush1.msra.mxu0 0.0
        %728 = vmatprep.subr.mxu0 0.0
        %729 = vmatpush1.msra.mxu0 0.0
        %730 = vmatprep.subr.mxu0 0.0
        %731 = vmatpush1.msra.mxu0 0.0
        %732 = vmatprep.subr.mxu0 0.0
        %733 = vmatpush1.msra.mxu0 0.0
        %734 = vmatprep.subr.mxu0 0.0
        %735 = vmatpush1.msra.mxu0 0.0
        %736 = vmatprep.subr.mxu0 0.0
        %737 = vmatpush1.msra.mxu0 0.0
        %738 = vmatprep.subr.mxu0 0.0
        %739 = vmatpush1.msra.mxu0 0.0
        %740 = vmatprep.subr.mxu0 0.0
        %741 = vmatpush1.msra.mxu0 0.0
        %742 = vmatprep.subr.mxu0 0.0
        %743 = vmatpush1.msra.mxu0 0.0
        %744 = vmatprep.subr.mxu0 0.0
        %745 = vmatpush1.msra.mxu0 0.0
        %746 = vmatprep.subr.mxu0 0.0
        %747 = vmatpush1.msra.mxu0 0.0
        %748 = vmatprep.subr.mxu0 %v707
        %749 = vmatpush1.msra.mxu0 %v706
        %750 = vmatprep.subr.mxu0 0.0
        %751 = vmatpush2.msra.mxu0 0.0
        %752 = vmatprep.subr.mxu0 0.0
        %753 = vmatpush2.msra.mxu0 0.0
        %754 = vmatprep.subr.mxu0 0.0
        %755 = vmatpush2.msra.mxu0 0.0
        %756 = vmatprep.subr.mxu0 0.0
        %757 = vmatpush2.msra.mxu0 0.0
        %758 = vmatprep.subr.mxu0 0.0
        %759 = vmatpush2.msra.mxu0 0.0
        %760 = vmatprep.subr.mxu0 0.0
        %761 = vmatpush2.msra.mxu0 0.0
        %762 = vmatprep.subr.mxu0 0.0
        %763 = vmatpush2.msra.mxu0 0.0
        %764 = vmatprep.subr.mxu0 0.0
        %765 = vmatpush2.msra.mxu0 0.0
        %766 = vmatprep.subr.mxu0 0.0
        %767 = vmatpush2.msra.mxu0 0.0
        %768 = vmatprep.subr.mxu0 0.0
        %769 = vmatpush2.msra.mxu0 0.0
        %770 = vmatprep.subr.mxu0 0.0
        %771 = vmatpush2.msra.mxu0 0.0
        %772 = vmatprep.subr.mxu0 0.0
        %773 = vmatpush2.msra.mxu0 0.0
        %774 = vmatprep.subr.mxu0 0.0
        %775 = vmatpush2.msra.mxu0 0.0
        %776 = vmatprep.subr.mxu0 0.0
        %777 = vmatpush2.msra.mxu0 0.0
        %778 = vmatprep.subr.mxu0 0.0
        %779 = vmatpush2.msra.mxu0 0.0
        %780 = vmatprep.subr.mxu0 0.0
        %781 = vmatpush2.msra.mxu0 0.0
        %782 = vmatprep.mubr.f32.mxu0 0.0
        %783 = vmatmul.mubr.f32.gmra.mxu0 %v716
        %v784 = vpop.f32.mrf.mxu0
        %v785 = vadd.f32 %v712, %v784
        %v786 = vpop.f32.mrf.mxu0
        %v787 = vadd.f32 %v712, %v786
        %788 = vdwg.mxu0
        %789 = vmatprep.subr.mxu0 0.0
        %790 = vmatpush1.msra.mxu0 0.0
        %791 = vmatprep.subr.mxu0 0.0
        %792 = vmatpush1.msra.mxu0 0.0
        %793 = vmatprep.subr.mxu0 0.0
        %794 = vmatpush1.msra.mxu0 0.0
        %795 = vmatprep.subr.mxu0 0.0
        %796 = vmatpush1.msra.mxu0 0.0
        %797 = vmatprep.subr.mxu0 0.0
        %798 = vmatpush1.msra.mxu0 0.0
        %799 = vmatprep.subr.mxu0 0.0
        %800 = vmatpush1.msra.mxu0 0.0
        %801 = vmatprep.subr.mxu0 0.0
        %802 = vmatpush1.msra.mxu0 0.0
        %803 = vmatprep.subr.mxu0 0.0
        %804 = vmatpush1.msra.mxu0 0.0
        %805 = vmatprep.subr.mxu0 0.0
        %806 = vmatpush1.msra.mxu0 0.0
        %807 = vmatprep.subr.mxu0 0.0
        %808 = vmatpush1.msra.mxu0 0.0
        %809 = vmatprep.subr.mxu0 0.0
        %810 = vmatpush1.msra.mxu0 0.0
        %811 = vmatprep.subr.mxu0 0.0
        %812 = vmatpush1.msra.mxu0 0.0
        %813 = vmatprep.subr.mxu0 0.0
        %814 = vmatpush1.msra.mxu0 0.0
        %815 = vmatprep.subr.mxu0 0.0
        %816 = vmatpush1.msra.mxu0 0.0
        %817 = vmatprep.subr.mxu0 0.0
        %818 = vmatpush1.msra.mxu0 0.0
        %819 = vmatprep.subr.mxu0 %v709
        %820 = vmatpush1.msra.mxu0 %v708
        %821 = vmatprep.subr.mxu0 0.0
        %822 = vmatpush2.msra.mxu0 0.0
        %823 = vmatprep.subr.mxu0 0.0
        %824 = vmatpush2.msra.mxu0 0.0
        %825 = vmatprep.subr.mxu0 0.0
        %826 = vmatpush2.msra.mxu0 0.0
        %827 = vmatprep.subr.mxu0 0.0
        %828 = vmatpush2.msra.mxu0 0.0
        %829 = vmatprep.subr.mxu0 0.0
        %830 = vmatpush2.msra.mxu0 0.0
        %831 = vmatprep.subr.mxu0 0.0
        %832 = vmatpush2.msra.mxu0 0.0
        %833 = vmatprep.subr.mxu0 0.0
        %834 = vmatpush2.msra.mxu0 0.0
        %835 = vmatprep.subr.mxu0 0.0
        %836 = vmatpush2.msra.mxu0 0.0
        %837 = vmatprep.subr.mxu0 0.0
        %838 = vmatpush2.msra.mxu0 0.0
        %839 = vmatprep.subr.mxu0 0.0
        %840 = vmatpush2.msra.mxu0 0.0
        %841 = vmatprep.subr.mxu0 0.0
        %842 = vmatpush2.msra.mxu0 0.0
        %843 = vmatprep.subr.mxu0 0.0
        %844 = vmatpush2.msra.mxu0 0.0
        %845 = vmatprep.subr.mxu0 0.0
        %846 = vmatpush2.msra.mxu0 0.0
        %847 = vmatprep.subr.mxu0 0.0
        %848 = vmatpush2.msra.mxu0 0.0
        %849 = vmatprep.subr.mxu0 0.0
        %850 = vmatpush2.msra.mxu0 0.0
        %851 = vmatprep.subr.mxu0 0.0
        %852 = vmatpush2.msra.mxu0 0.0
        %853 = vmatprep.mubr.f32.mxu0 0.0
        %854 = vmatmul.mubr.f32.gmra.mxu0 %v716
        %v855 = vpop.f32.mrf.mxu0
        %v856 = vadd.f32 %v712, %v855
        %v857 = vpop.f32.mrf.mxu0
        %v858 = vadd.f32 %v712, %v857
        %859 = vdwg.mxu0
        %v860 = vmul.f32 %v785, 0.5
        %v861 = vmul.f32 %v787, 0.5
        %v862 = vmul.f32 %v856, 0.5
        %v863 = vmul.f32 %v858, 0.5
        %v864 = vmul.f32 %v785, 0.70710677
        %v865 = vmul.f32 %v787, 0.70710677
        %v866 = vmul.f32 %v856, 0.70710677
        %v867 = vmul.f32 %v858, 0.70710677
        %v868 = verf.f32.pop %v864
        %v869 = verf.f32.pop %v865
        %v870 = verf.f32.pop %v866
        %v871 = verf.f32.pop %v867
        %v872 = vadd.f32 %v868, 1.0
        %v873 = vadd.f32 %v869, 1.0
        %v874 = vadd.f32 %v870, 1.0
        %v875 = vadd.f32 %v871, 1.0
        %v876 = vmul.f32 %v860, %v872
        %v877 = vmul.f32 %v861, %v873
        %v878 = vmul.f32 %v862, %v874
        %v879 = vmul.f32 %v863, %v875
        %880 = vset.pattern.permute.xlu0 52
        %881 = vperm.xlu0 %880, %v175
        %v882 = vpop.permute.xlu0 %881
        %884 = vrot.lane.b32.xlu0 %v175, 96
        %v885 = vpop.permute.xlu0 %884
        %v886 = vsel %vm185, %v885, 0
        %888 = vmatprep.subr.mxu0 0.0
        %889 = vmatpush1.msra.mxu0 0.0
        %890 = vmatprep.subr.mxu0 0.0
        %891 = vmatpush1.msra.mxu0 0.0
        %892 = vmatprep.subr.mxu0 0.0
        %893 = vmatpush1.msra.mxu0 0.0
        %894 = vmatprep.subr.mxu0 0.0
        %895 = vmatpush1.msra.mxu0 0.0
        %896 = vmatprep.subr.mxu0 0.0
        %897 = vmatpush1.msra.mxu0 0.0
        %898 = vmatprep.subr.mxu0 0.0
        %899 = vmatpush1.msra.mxu0 0.0
        %900 = vmatprep.subr.mxu0 0.0
        %901 = vmatpush1.msra.mxu0 0.0
        %902 = vmatprep.subr.mxu0 0.0
        %903 = vmatpush1.msra.mxu0 0.0
        %904 = vmatprep.subr.mxu0 0.0
        %905 = vmatpush1.msra.mxu0 0.0
        %906 = vmatprep.subr.mxu0 0.0
        %907 = vmatpush1.msra.mxu0 0.0
        %908 = vmatprep.subr.mxu0 0.0
        %909 = vmatpush1.msra.mxu0 0.0
        %910 = vmatprep.subr.mxu0 0.0
        %911 = vmatpush1.msra.mxu0 0.0
        %912 = vmatprep.subr.mxu0 0.0
        %913 = vmatpush1.msra.mxu0 0.0
        %914 = vmatprep.subr.mxu0 0.0
        %915 = vmatpush1.msra.mxu0 0.0
        %916 = vmatprep.subr.mxu0 0.0
        %917 = vmatpush1.msra.mxu0 0.0
        %918 = vmatprep.subr.mxu0 %v877
        %919 = vmatpush1.msra.mxu0 %v876
        %920 = vmatprep.subr.mxu0 0.0
        %921 = vmatpush2.msra.mxu0 0.0
        %922 = vmatprep.subr.mxu0 0.0
        %923 = vmatpush2.msra.mxu0 0.0
        %924 = vmatprep.subr.mxu0 0.0
        %925 = vmatpush2.msra.mxu0 0.0
        %926 = vmatprep.subr.mxu0 0.0
        %927 = vmatpush2.msra.mxu0 0.0
        %928 = vmatprep.subr.mxu0 0.0
        %929 = vmatpush2.msra.mxu0 0.0
        %930 = vmatprep.subr.mxu0 0.0
        %931 = vmatpush2.msra.mxu0 0.0
        %932 = vmatprep.subr.mxu0 0.0
        %933 = vmatpush2.msra.mxu0 0.0
        %934 = vmatprep.subr.mxu0 0.0
        %935 = vmatpush2.msra.mxu0 0.0
        %936 = vmatprep.subr.mxu0 0.0
        %937 = vmatpush2.msra.mxu0 0.0
        %938 = vmatprep.subr.mxu0 0.0
        %939 = vmatpush2.msra.mxu0 0.0
        %940 = vmatprep.subr.mxu0 0.0
        %941 = vmatpush2.msra.mxu0 0.0
        %942 = vmatprep.subr.mxu0 0.0
        %943 = vmatpush2.msra.mxu0 0.0
        %944 = vmatprep.subr.mxu0 0.0
        %945 = vmatpush2.msra.mxu0 0.0
        %946 = vmatprep.subr.mxu0 0.0
        %947 = vmatpush2.msra.mxu0 0.0
        %948 = vmatprep.subr.mxu0 0.0
        %949 = vmatpush2.msra.mxu0 0.0
        %950 = vmatprep.subr.mxu0 0.0
        %951 = vmatpush2.msra.mxu0 0.0
        %952 = vmatprep.mubr.f32.mxu0 0.0
        %953 = vmatmul.mubr.f32.gmra.mxu0 %v886
        %v954 = vpop.f32.mrf.mxu0
        %v955 = vadd.f32 %v882, %v954
        %v956 = vpop.f32.mrf.mxu0
        %v957 = vadd.f32 %v882, %v956
        %958 = vdwg.mxu0
        %959 = vmatprep.subr.mxu0 0.0
        %960 = vmatpush1.msra.mxu0 0.0
        %961 = vmatprep.subr.mxu0 0.0
        %962 = vmatpush1.msra.mxu0 0.0
        %963 = vmatprep.subr.mxu0 0.0
        %964 = vmatpush1.msra.mxu0 0.0
        %965 = vmatprep.subr.mxu0 0.0
        %966 = vmatpush1.msra.mxu0 0.0
        %967 = vmatprep.subr.mxu0 0.0
        %968 = vmatpush1.msra.mxu0 0.0
        %969 = vmatprep.subr.mxu0 0.0
        %970 = vmatpush1.msra.mxu0 0.0
        %971 = vmatprep.subr.mxu0 0.0
        %972 = vmatpush1.msra.mxu0 0.0
        %973 = vmatprep.subr.mxu0 0.0
        %974 = vmatpush1.msra.mxu0 0.0
        %975 = vmatprep.subr.mxu0 0.0
        %976 = vmatpush1.msra.mxu0 0.0
        %977 = vmatprep.subr.mxu0 0.0
        %978 = vmatpush1.msra.mxu0 0.0
        %979 = vmatprep.subr.mxu0 0.0
        %980 = vmatpush1.msra.mxu0 0.0
        %981 = vmatprep.subr.mxu0 0.0
        %982 = vmatpush1.msra.mxu0 0.0
        %983 = vmatprep.subr.mxu0 0.0
        %984 = vmatpush1.msra.mxu0 0.0
        %985 = vmatprep.subr.mxu0 0.0
        %986 = vmatpush1.msra.mxu0 0.0
        %987 = vmatprep.subr.mxu0 0.0
        %988 = vmatpush1.msra.mxu0 0.0
        %989 = vmatprep.subr.mxu0 %v879
        %990 = vmatpush1.msra.mxu0 %v878
        %991 = vmatprep.subr.mxu0 0.0
        %992 = vmatpush2.msra.mxu0 0.0
        %993 = vmatprep.subr.mxu0 0.0
        %994 = vmatpush2.msra.mxu0 0.0
        %995 = vmatprep.subr.mxu0 0.0
        %996 = vmatpush2.msra.mxu0 0.0
        %997 = vmatprep.subr.mxu0 0.0
        %998 = vmatpush2.msra.mxu0 0.0
        %999 = vmatprep.subr.mxu0 0.0
        %1000 = vmatpush2.msra.mxu0 0.0
        %1001 = vmatprep.subr.mxu0 0.0
        %1002 = vmatpush2.msra.mxu0 0.0
        %1003 = vmatprep.subr.mxu0 0.0
        %1004 = vmatpush2.msra.mxu0 0.0
        %1005 = vmatprep.subr.mxu0 0.0
        %1006 = vmatpush2.msra.mxu0 0.0
        %1007 = vmatprep.subr.mxu0 0.0
        %1008 = vmatpush2.msra.mxu0 0.0
        %1009 = vmatprep.subr.mxu0 0.0
        %1010 = vmatpush2.msra.mxu0 0.0
        %1011 = vmatprep.subr.mxu0 0.0
        %1012 = vmatpush2.msra.mxu0 0.0
        %1013 = vmatprep.subr.mxu0 0.0
        %1014 = vmatpush2.msra.mxu0 0.0
        %1015 = vmatprep.subr.mxu0 0.0
        %1016 = vmatpush2.msra.mxu0 0.0
        %1017 = vmatprep.subr.mxu0 0.0
        %1018 = vmatpush2.msra.mxu0 0.0
        %1019 = vmatprep.subr.mxu0 0.0
        %1020 = vmatpush2.msra.mxu0 0.0
        %1021 = vmatprep.subr.mxu0 0.0
        %1022 = vmatpush2.msra.mxu0 0.0
        %1023 = vmatprep.mubr.f32.mxu0 0.0
        %1024 = vmatmul.mubr.f32.gmra.mxu0 %v886
        %v1025 = vpop.f32.mrf.mxu0
        %v1026 = vadd.f32 %v882, %v1025
        %v1027 = vpop.f32.mrf.mxu0
        %v1028 = vadd.f32 %v882, %v1027
        %1029 = vdwg.mxu0
        %v1030 = vmul.f32 %v955, 0.5
        %v1031 = vmul.f32 %v957, 0.5
        %v1032 = vmul.f32 %v1026, 0.5
        %v1033 = vmul.f32 %v1028, 0.5
        %v1034 = vmul.f32 %v955, 0.70710677
        %v1035 = vmul.f32 %v957, 0.70710677
        %v1036 = vmul.f32 %v1026, 0.70710677
        %v1037 = vmul.f32 %v1028, 0.70710677
        %v1038 = verf.f32.pop %v1034
        %v1039 = verf.f32.pop %v1035
        %v1040 = verf.f32.pop %v1036
        %v1041 = verf.f32.pop %v1037
        %v1042 = vadd.f32 %v1038, 1.0
        %v1043 = vadd.f32 %v1039, 1.0
        %v1044 = vadd.f32 %v1040, 1.0
        %v1045 = vadd.f32 %v1041, 1.0
        %v1046 = vmul.f32 %v1030, %v1042
        %v1047 = vmul.f32 %v1031, %v1043
        %v1048 = vmul.f32 %v1032, %v1044
        %v1049 = vmul.f32 %v1033, %v1045
        %1050 = vset.pattern.permute.xlu0 53
        %1051 = vperm.xlu0 %1050, %v175
        %v1052 = vpop.permute.xlu0 %1051
        %1054 = vrot.lane.b32.xlu0 %v175, 88
        %v1055 = vpop.permute.xlu0 %1054
        %v1056 = vsel %vm185, %v1055, 0
        %1058 = vmatprep.subr.mxu0 0.0
        %1059 = vmatpush1.msra.mxu0 0.0
        %1060 = vmatprep.subr.mxu0 0.0
        %1061 = vmatpush1.msra.mxu0 0.0
        %1062 = vmatprep.subr.mxu0 0.0
        %1063 = vmatpush1.msra.mxu0 0.0
        %1064 = vmatprep.subr.mxu0 0.0
        %1065 = vmatpush1.msra.mxu0 0.0
        %1066 = vmatprep.subr.mxu0 0.0
        %1067 = vmatpush1.msra.mxu0 0.0
        %1068 = vmatprep.subr.mxu0 0.0
        %1069 = vmatpush1.msra.mxu0 0.0
        %1070 = vmatprep.subr.mxu0 0.0
        %1071 = vmatpush1.msra.mxu0 0.0
        %1072 = vmatprep.subr.mxu0 0.0
        %1073 = vmatpush1.msra.mxu0 0.0
        %1074 = vmatprep.subr.mxu0 0.0
        %1075 = vmatpush1.msra.mxu0 0.0
        %1076 = vmatprep.subr.mxu0 0.0
        %1077 = vmatpush1.msra.mxu0 0.0
        %1078 = vmatprep.subr.mxu0 0.0
        %1079 = vmatpush1.msra.mxu0 0.0
        %1080 = vmatprep.subr.mxu0 0.0
        %1081 = vmatpush1.msra.mxu0 0.0
        %1082 = vmatprep.subr.mxu0 0.0
        %1083 = vmatpush1.msra.mxu0 0.0
        %1084 = vmatprep.subr.mxu0 0.0
        %1085 = vmatpush1.msra.mxu0 0.0
        %1086 = vmatprep.subr.mxu0 0.0
        %1087 = vmatpush1.msra.mxu0 0.0
        %1088 = vmatprep.subr.mxu0 %v1047
        %1089 = vmatpush1.msra.mxu0 %v1046
        %1090 = vmatprep.subr.mxu0 0.0
        %1091 = vmatpush2.msra.mxu0 0.0
        %1092 = vmatprep.subr.mxu0 0.0
        %1093 = vmatpush2.msra.mxu0 0.0
        %1094 = vmatprep.subr.mxu0 0.0
        %1095 = vmatpush2.msra.mxu0 0.0
        %1096 = vmatprep.subr.mxu0 0.0
        %1097 = vmatpush2.msra.mxu0 0.0
        %1098 = vmatprep.subr.mxu0 0.0
        %1099 = vmatpush2.msra.mxu0 0.0
        %1100 = vmatprep.subr.mxu0 0.0
        %1101 = vmatpush2.msra.mxu0 0.0
        %1102 = vmatprep.subr.mxu0 0.0
        %1103 = vmatpush2.msra.mxu0 0.0
        %1104 = vmatprep.subr.mxu0 0.0
        %1105 = vmatpush2.msra.mxu0 0.0
        %1106 = vmatprep.subr.mxu0 0.0
        %1107 = vmatpush2.msra.mxu0 0.0
        %1108 = vmatprep.subr.mxu0 0.0
        %1109 = vmatpush2.msra.mxu0 0.0
        %1110 = vmatprep.subr.mxu0 0.0
        %1111 = vmatpush2.msra.mxu0 0.0
        %1112 = vmatprep.subr.mxu0 0.0
        %1113 = vmatpush2.msra.mxu0 0.0
        %1114 = vmatprep.subr.mxu0 0.0
        %1115 = vmatpush2.msra.mxu0 0.0
        %1116 = vmatprep.subr.mxu0 0.0
        %1117 = vmatpush2.msra.mxu0 0.0
        %1118 = vmatprep.subr.mxu0 0.0
        %1119 = vmatpush2.msra.mxu0 0.0
        %1120 = vmatprep.subr.mxu0 0.0
        %1121 = vmatpush2.msra.mxu0 0.0
        %1122 = vmatprep.mubr.f32.mxu0 0.0
        %1123 = vmatmul.mubr.f32.gmra.mxu0 %v1056
        %v1124 = vpop.f32.mrf.mxu0
        %v1125 = vadd.f32 %v1052, %v1124
        %v1126 = vpop.f32.mrf.mxu0
        %v1127 = vadd.f32 %v1052, %v1126
        %1128 = vdwg.mxu0
        %1129 = vmatprep.subr.mxu0 0.0
        %1130 = vmatpush1.msra.mxu0 0.0
        %1131 = vmatprep.subr.mxu0 0.0
        %1132 = vmatpush1.msra.mxu0 0.0
        %1133 = vmatprep.subr.mxu0 0.0
        %1134 = vmatpush1.msra.mxu0 0.0
        %1135 = vmatprep.subr.mxu0 0.0
        %1136 = vmatpush1.msra.mxu0 0.0
        %1137 = vmatprep.subr.mxu0 0.0
        %1138 = vmatpush1.msra.mxu0 0.0
        %1139 = vmatprep.subr.mxu0 0.0
        %1140 = vmatpush1.msra.mxu0 0.0
        %1141 = vmatprep.subr.mxu0 0.0
        %1142 = vmatpush1.msra.mxu0 0.0
        %1143 = vmatprep.subr.mxu0 0.0
        %1144 = vmatpush1.msra.mxu0 0.0
        %1145 = vmatprep.subr.mxu0 0.0
        %1146 = vmatpush1.msra.mxu0 0.0
        %1147 = vmatprep.subr.mxu0 0.0
        %1148 = vmatpush1.msra.mxu0 0.0
        %1149 = vmatprep.subr.mxu0 0.0
        %1150 = vmatpush1.msra.mxu0 0.0
        %1151 = vmatprep.subr.mxu0 0.0
        %1152 = vmatpush1.msra.mxu0 0.0
        %1153 = vmatprep.subr.mxu0 0.0
        %1154 = vmatpush1.msra.mxu0 0.0
        %1155 = vmatprep.subr.mxu0 0.0
        %1156 = vmatpush1.msra.mxu0 0.0
        %1157 = vmatprep.subr.mxu0 0.0
        %1158 = vmatpush1.msra.mxu0 0.0
        %1159 = vmatprep.subr.mxu0 %v1049
        %1160 = vmatpush1.msra.mxu0 %v1048
        %1161 = vmatprep.subr.mxu0 0.0
        %1162 = vmatpush2.msra.mxu0 0.0
        %1163 = vmatprep.subr.mxu0 0.0
        %1164 = vmatpush2.msra.mxu0 0.0
        %1165 = vmatprep.subr.mxu0 0.0
        %1166 = vmatpush2.msra.mxu0 0.0
        %1167 = vmatprep.subr.mxu0 0.0
        %1168 = vmatpush2.msra.mxu0 0.0
        %1169 = vmatprep.subr.mxu0 0.0
        %1170 = vmatpush2.msra.mxu0 0.0
        %1171 = vmatprep.subr.mxu0 0.0
        %1172 = vmatpush2.msra.mxu0 0.0
        %1173 = vmatprep.subr.mxu0 0.0
        %1174 = vmatpush2.msra.mxu0 0.0
        %1175 = vmatprep.subr.mxu0 0.0
        %1176 = vmatpush2.msra.mxu0 0.0
        %1177 = vmatprep.subr.mxu0 0.0
        %1178 = vmatpush2.msra.mxu0 0.0
        %1179 = vmatprep.subr.mxu0 0.0
        %1180 = vmatpush2.msra.mxu0 0.0
        %1181 = vmatprep.subr.mxu0 0.0
        %1182 = vmatpush2.msra.mxu0 0.0
        %1183 = vmatprep.subr.mxu0 0.0
        %1184 = vmatpush2.msra.mxu0 0.0
        %1185 = vmatprep.subr.mxu0 0.0
        %1186 = vmatpush2.msra.mxu0 0.0
        %1187 = vmatprep.subr.mxu0 0.0
        %1188 = vmatpush2.msra.mxu0 0.0
        %1189 = vmatprep.subr.mxu0 0.0
        %1190 = vmatpush2.msra.mxu0 0.0
        %1191 = vmatprep.subr.mxu0 0.0
        %1192 = vmatpush2.msra.mxu0 0.0
        %1193 = vmatprep.mubr.f32.mxu0 0.0
        %1194 = vmatmul.mubr.f32.gmra.mxu0 %v1056
        %v1195 = vpop.f32.mrf.mxu0
        %v1196 = vadd.f32 %v1052, %v1195
        %v1197 = vpop.f32.mrf.mxu0
        %v1198 = vadd.f32 %v1052, %v1197
        %1199 = vdwg.mxu0
        %1200 = vst [vmem:[%s172] sm:$0xff] %v1125
        %1201 = vst [vmem:[%s172 + $0x8] sm:$0xff] %v1127
        %1202 = vst [vmem:[%s172 + $0x10] sm:$0xff] %v1196
        %1203 = vst [vmem:[%s172 + $0x18] sm:$0xff] %v1198
        %s1204 = sand.u32 %s75, 1
        %s1205 = scalar_lea.sflag [#allocation4], %s1204
        %s1206 = sand.u32 %s75, 1
        %s1207 = smul.addr %s1206, 32
        %s1208 = scalar_lea.vmem [#allocation7], %s1207
        // Predicated region
        $region37: #{tpu_custom_call.1} parent=27 // pred_check
          %p1209 = pneg %p85
        $region38: #{tpu_custom_call.1} parent=27 // pred_check_branch
          %1211 = sbr.rel (%p1209) target = $region40
        $region39: #{tpu_custom_call.1} parent=27 // pred_region
          %s1212 = smul.u32 4, %s20
          %s1214 = ssub.s32 512, 512
          %1215 = vsyncadd %s1205, %s1214
          %s1216 = smul.addr %s1212, 128
          %s1217 = scalar_lea.hbm %s2, %s1216
          %s1219 = sshll.u32 %s1208, 4
          %s1220 = int_to_ptr.vmem [resolvable:$true] %s1219
          %1222 = dma.vmem_to_hbm [thread:$0]  %s1220, 512, %s1217, %s1205
        $region40: #{tpu_custom_call.1} parent=27 // pred_fallthru
          _
      $region28: #{tpu_custom_call.1} parent=5 // pred_fallthru
        _
      %p1223 = scmp.le.s32.totalorder 2, %s15
      // Predicated region
      $region41: #{tpu_custom_call.1} parent=5 // pred_check
        %p1224 = pneg %p1223
      $region42: #{tpu_custom_call.1} parent=5 // pred_check_branch
        %1226 = sbr.rel (%p1224) target = $region44
      $region43: #{tpu_custom_call.1} parent=5 // pred_region
        %s1227 = ssub.s32 %s15, 2
        // Predicated region
        $region45: #{tpu_custom_call.1} parent=43 // pred_check
          %p1228 = pneg %p91
        $region46: #{tpu_custom_call.1} parent=43 // pred_check_branch
          %1230 = sbr.rel (%p1228) target = $region48
        $region47: #{tpu_custom_call.1} parent=43 // pred_region
          %s1231 = sand.u32 %s76, 1
          %s1232 = scalar_lea.sflag [#allocation4], %s1231
          %s1233 = sand.u32 %s76, 1
          %s1234 = smul.addr %s1233, 32
          %s1235 = scalar_lea.vmem [#allocation7], %s1234
          %1236 = dma.done %s1232, 512
        $region48: #{tpu_custom_call.1} parent=43 // pred_fallthru
          _
      $region44: #{tpu_custom_call.1} parent=5 // pred_fallthru
        _
    $region6: #{tpu_custom_call.1} parent=1 // loop_footer
      %s19 = sadd.s32 1, %s15
    $region7: #{tpu_custom_call.1} parent=1 // loop_footer_branch
      %14 = sbr.rel target = $region3
    $region8: #{tpu_custom_call.1} parent=1 // loop_exit
      _
    %1237 = vsyncpa [#allocation3], 1
    %s1238 = scalar_lea.sflag [#allocation3], 1
    %1239 = vsyncpa %s1238, 1
    %1240 = vsyncpa [#allocation6], 1
    %1241 = vsyncpa [#allocation4], 1
    %s1242 = scalar_lea.sflag [#allocation4], 1
    %1243 = vsyncpa %s1242, 1

</llo_original>
